<compile_context>
chip_gen: v6e
topology: v6e:2x2x1
jax: 0.10.0
libtpu: 0.0.40
codegen_flags: <defaults>
</compile_context>

<pallas_src>
import jax
import jax.numpy as jnp
from jax.experimental import pallas as pl
from jax.experimental.pallas import tpu as pltpu


def _copy_kernel(x_ref, o_ref):
    # Empty nn.Sequential == identity.  Copy the current VMEM tile.
    o_ref[...] = x_ref[...]


def _identity_copy_2d(x2d: jax.Array, tb_rows: int = 2048) -> jax.Array:
    """In-place (aliased) identity copy of a 2-D array, tiled over rows."""
    rows, cols = x2d.shape
    # Block rows: either the full row extent (always legal) or a multiple of 8.
    tb = rows if rows <= tb_rows else tb_rows
    grid = (pl.cdiv(rows, tb),)
    return pl.pallas_call(
        _copy_kernel,
        out_shape=jax.ShapeDtypeStruct((rows, cols), x2d.dtype),
        grid=grid,
        in_specs=[pl.BlockSpec((tb, cols), lambda i: (i, 0))],
        out_specs=pl.BlockSpec((tb, cols), lambda i: (i, 0)),
        # Output aliases input HBM buffer: no extra allocation / round trip.
        input_output_aliases={0: 0},
        compiler_params=pltpu.CompilerParams(
            dimension_semantics=("parallel",),
        ),
    )(x2d)


def net_forward(x: jax.Array) -> jax.Array:
    """Forward pass of `Net` (empty Sequential -> identity) as a Pallas kernel."""
    total = x.size
    if total > 0 and total % 128 == 0:
        # Lane-dense slab: last dim = 128 full lanes (unmasked stores),
        # rows tiled for pipelined, double-buffered DMA.
        rows = total // 128
        y2d = _identity_copy_2d(jnp.reshape(x, (rows, 128)))
        return jnp.reshape(y2d, x.shape)
    # Fallback for sizes not divisible by 128 (small / awkward shapes like
    # the (8, 2) addition-net batch): single full-array block, still aliased.
    x2d = x if x.ndim == 2 else jnp.reshape(x, (1, max(total, 1)))
    y2d = _identity_copy_2d(x2d)
    return jnp.reshape(y2d, x.shape)


if __name__ == "__main__":
    # Donate the input so the alias declared by input_output_aliases is honored
    # end-to-end (no defensive XLA copy).
    fwd = jax.jit(net_forward, donate_argnums=(0,))

    # 1) Small "addition-net"-style input: batch of 8 pairs of numbers.
    x_small = jax.random.normal(jax.random.PRNGKey(0), (8, 2), dtype=jnp.float32)
    expected_small = jax.device_get(x_small)  # host copy (input is donated)
    y_small = fwd(x_small)
    jax.block_until_ready(y_small)
    assert y_small.shape == expected_small.shape
    assert y_small.dtype == jnp.float32
    assert bool(jnp.allclose(y_small, jnp.asarray(expected_small)))

    # 2) A modest lane-dense input that exercises the tiled / pipelined path
    #    (4096 rows -> 2 grid steps of 2048x128 tiles).
    x_big = jax.random.normal(jax.random.PRNGKey(1), (4096, 128), dtype=jnp.float32)
    expected_big = jax.device_get(x_big)
    y_big = fwd(x_big)
    jax.block_until_ready(y_big)
    assert y_big.shape == expected_big.shape
    assert bool(jnp.allclose(y_big, jnp.asarray(expected_big)))

    print("KERNEL_OK")
</pallas_src>

<mosaic_0001>
module attributes {stable_mosaic.version = 11 : i64} {
  func.func @_copy_kernel(%arg0: i32, %arg1: memref<8x2xf32, #tpu.memory_space<vmem>>, %arg2: memref<8x2xf32, #tpu.memory_space<vmem>>) attributes {dimension_semantics = [#tpu.dimension_semantics<parallel>], iteration_bounds = array<i64: 1>, scalar_prefetch = 0 : i64, scratch_operands = 0 : i64, tpu.core_type = #tpu.core_type<tc>, window_params = [{transform_indices = @transform_0, window_bounds = array<i64: 8, 2>}, {transform_indices = @transform_1, window_bounds = array<i64: 8, 2>}]} {
    %c0 = arith.constant 0 : index
    %c0_0 = arith.constant 0 : index
    %0 = vector.load %arg1[%c0, %c0_0] : memref<8x2xf32, #tpu.memory_space<vmem>>, vector<8x2xf32>
    %c0_1 = arith.constant 0 : index
    %c0_2 = arith.constant 0 : index
    %1 = vector.load %arg2[%c0_1, %c0_2] : memref<8x2xf32, #tpu.memory_space<vmem>>, vector<8x2xf32>
    tpu.vector_store %arg2[%c0_1, %c0_2], %0 {strides = array<i32>} : memref<8x2xf32, #tpu.memory_space<vmem>>, vector<8x2xf32>,
    return
  }
  func.func @transform_0(%arg0: i32) -> (i32, i32) {
    %c0_i32 = arith.constant 0 : i32
    %c0_i32_0 = arith.constant 0 : i32
    return %arg0, %c0_i32 : i32, i32
  }
  func.func @transform_1(%arg0: i32) -> (i32, i32) {
    %c0_i32 = arith.constant 0 : i32
    %c0_i32_0 = arith.constant 0 : i32
    return %arg0, %c0_i32 : i32, i32
  }
}

</mosaic_0001>

<llo_original>
// kernel: net_forward.1
$region0: #{net_forward.1}
  #allocation0 [shape = 'u32[]', space=smem, size = 0x4, offset = 0x4, fixed_abs, tag = 'smem constant byte address 0x4 - core index']
  #allocation1 [shape = 'u32[144,128]{1,0:T(1,128)}', space=vmem, size = 0x12000, scoped, tag = 'internal scratch']
  %s0 = inlined_call_operand.vmem [shape: f32[8,2], index: 0, kind: input, shape index: {}, may-alias: {0,1}]
  %s1 = inlined_call_operand.vmem [shape: f32[8,2], index: 1, kind: output, shape index: {}, may-alias: {0,1}]
  %s2 = sld [smem:[#allocation0]]
  $region14: #{net_forward.1} parent=0
    _
  %s4 = ssub.s32 1, %s2
  %s5 = scalar_select 0, %s4, %s2
  // Predicated region
  $region2: #{net_forward.1} parent=0 // pred_check
    _
  $region3: #{net_forward.1} parent=0 // pred_check_branch
    %7 = sbr.rel (0) target = $region5
  $region4: #{net_forward.1} parent=0 // pred_region
    _
  $region5: #{net_forward.1} parent=0 // pred_fallthru
    _
  %v8 = vld [vmem:[%s0] sm:$0xff]
  %vm9 = vcmask 15360
  %10 = vst.msk [vmem:[%s1] sm:$0xff] %vm9, %v8
  // Predicated region
  $region6: #{net_forward.1} parent=0 // pred_check
    _
  $region7: #{net_forward.1} parent=0 // pred_check_branch
    %12 = sbr.rel (0) target = $region9
  $region8: #{net_forward.1} parent=0 // pred_region
    _
  $region9: #{net_forward.1} parent=0 // pred_fallthru
    _
  // Predicated region
  $region10: #{net_forward.1} parent=0 // pred_check
    _
  $region11: #{net_forward.1} parent=0 // pred_check_branch
    %14 = sbr.rel (0) target = $region13
  $region12: #{net_forward.1} parent=0 // pred_region
    _
  $region13: #{net_forward.1} parent=0 // pred_fallthru
    _

</llo_original>
